<compile_context>
chip_gen: v5e
topology: v5e:2x2
jax: 0.10.0
libtpu: 0.0.40
codegen_flags: <defaults>
</compile_context>

<pallas_src>
import functools
import math

import jax
import jax.numpy as jnp
from jax.experimental import pallas as pl
from jax.experimental.pallas import tpu as pltpu


def _round_up(x, m):
    return ((x + m - 1) // m) * m


def _cdiv(a, b):
    return (a + b - 1) // b


def _vmem_block_bytes(rows, cols, dtype):
    """Bytes a (rows, cols) block occupies in VMEM after (sublane, lane)
    padding: last dim pads to 128 lanes, second-to-last to 8*(4/itemsize)."""
    item = jnp.dtype(dtype).itemsize
    sub = 32 // item
    return _round_up(max(rows, 1), sub) * _round_up(max(cols, 1), 128) * item


def _tensorcores_per_chip():
    """Heuristic TensorCore count of the local chip (v4/v5p/v7x: 2 TCs)."""
    try:
        kind = (jax.devices()[0].device_kind or "").lower()
    except Exception:
        return 1
    return 2 if any(t in kind for t in ("v7", "v5p", "v4")) else 1


def _vrnn_proposal_kernel(obs_ref, h_ref, act_ref,
                          w1o_ref, w1h_ref, w1a_ref, b1_ref,
                          wh_ref, bh_ref, out_ref, *, z_dim):
    cd = wh_ref.dtype  # compute dtype (bf16 by default); inputs arrive f32.

    # enc = ReLU([obs|h|act] @ W1 + b1) as a split-K accumulation (no in-kernel
    # lane concat).  Casts to the compute dtype happen here (VPU, free slot),
    # so the wrapper never re-streams the activations through HBM.
    enc = jnp.dot(obs_ref[...].astype(cd), w1o_ref[...],
                  preferred_element_type=jnp.float32)
    enc = enc + jnp.dot(h_ref[...].astype(cd), w1h_ref[...],
                        preferred_element_type=jnp.float32)
    enc = enc + jnp.dot(act_ref[...].astype(cd), w1a_ref[...],
                        preferred_element_type=jnp.float32)
    enc = jnp.maximum(enc + b1_ref[...], 0.0)          # f32 bias + ReLU
    enc = enc.astype(cd)

    # Fused heads: one matmul producing [mean | pre-softplus std].
    heads = jnp.dot(enc, wh_ref[...],
                    preferred_element_type=jnp.float32) + bh_ref[...]

    # Numerically stable softplus; per-lane select keeps lanes < z_dim linear.
    sp = jnp.maximum(heads, 0.0) + jnp.log1p(jnp.exp(-jnp.abs(heads)))
    lane = jax.lax.broadcasted_iota(jnp.int32, heads.shape, 1)
    result = jnp.where(lane < z_dim, heads, sp)

    # Lane-dense writeback: when the out block is the packed
    # (tile*F_out/128, 128) view, this reshape is an in-register relayout
    # (XLU slot) and the store is a full-lane vst instead of a masked one.
    out_ref[...] = result.reshape(out_ref.shape).astype(out_ref.dtype)


def vrnn_proposal_forward(encoded_observation, h, encoded_action, params, *,
                          row_tile=2048, compute_dtype=jnp.bfloat16,
                          vmem_budget_bytes=None):
    """encoded_observation: (B, P, obs_dim), h: (B, P, h_dim),
    encoded_action: (B, P, act_dim).  Returns (mean, std), each (B, P, z_dim),
    in float32."""
    B, P, obs_dim = encoded_observation.shape
    h_dim = h.shape[-1]
    act_dim = encoded_action.shape[-1]
    z_dim = params["bm"].shape[-1]
    F_out = 2 * z_dim
    R = B * P

    # Inputs keep their stored dtype (f32): no wrapper astype / pad pass (each
    # would be a full extra HBM read+write of the activations).
    obs2 = encoded_observation.reshape(R, obs_dim)
    h2 = h.reshape(R, h_dim)
    act2 = encoded_action.reshape(R, act_dim)
    in_dtype = obs2.dtype

    cd = compute_dtype
    w1 = params["w1"].astype(cd)
    w1o = w1[:obs_dim]
    w1h = w1[obs_dim:obs_dim + h_dim]
    w1a = w1[obs_dim + h_dim:]
    b1 = params["b1"].astype(jnp.float32).reshape(1, h_dim)
    wh = jnp.concatenate([params["wm"], params["ws"]], axis=1).astype(cd)
    bh = jnp.concatenate([params["bm"], params["bs"]],
                         axis=1).astype(jnp.float32).reshape(1, F_out)
    # TODO(synk): if the upstream encoders can emit one packed (R, obs+h+act)
    # slab, feed a single input stream / single-K matmul instead of split-K.

    # ---------------- row-tile selection ----------------
    row_align = 32 // jnp.dtype(in_dtype).itemsize        # 8 for f32 inputs
    pack_align = 1024 // math.gcd(F_out, 1024)             # tile % pack_align==0
                                                            # -> packed rows x8
    tile = min(_round_up(max(row_tile, row_align), row_align),
               _round_up(R, row_align))
    # Prefer a tile that permits the lane-dense packed output, unless that
    # would more than double the padded row count of a tiny problem.
    if tile >= pack_align or _round_up(R, pack_align) <= 2 * _round_up(R, row_align):
        tile = _round_up(tile, max(pack_align, row_align))

    # Correct VMEM model (narrow tiles pad to 128 lanes).  14 MiB default
    # budget needs no scoped-VMEM override on any generation; cap at 44 MiB
    # so big user budgets stay safe on v7x (64 MiB physical).
    weight_bytes = 2 * sum(_vmem_block_bytes(r, c, d) for r, c, d in (
        (obs_dim, h_dim, cd), (h_dim, h_dim, cd), (act_dim, h_dim, cd),
        (1, h_dim, jnp.float32), (h_dim, F_out, cd), (1, F_out, jnp.float32)))

    def _footprint(t):
        pk = (t * F_out) % 1024 == 0
        out_rows, out_cols = (t * F_out // 128, 128) if pk else (t, F_out)
        n = 2 * sum(_vmem_block_bytes(t, f, in_dtype)
                    for f in (obs_dim, h_dim, act_dim))
        n += 2 * _vmem_block_bytes(out_rows, out_cols, jnp.float32)
        return n + weight_bytes

    budget = (14 << 20) if vmem_budget_bytes is None else int(vmem_budget_bytes)
    budget = min(budget, 44 << 20)
    while tile > row_align and _footprint(tile) > budget:
        tile = max(row_align, _round_up(tile // 2, row_align))

    # Megacore balance: on 2-TC chips keep the step count a multiple of the
    # core count; single-TC chips skip this (it would only add steps).
    ncores = _tensorcores_per_chip()
    if ncores > 1 and R >= ncores * 512:
        steps = _cdiv(R, tile)
        if steps % ncores:
            for align in (pack_align, row_align):
                cand = _round_up(_cdiv(R, _round_up(steps, ncores)),
                                 max(align, row_align))
                if (cand >= 512 and _cdiv(R, cand) % ncores == 0
                        and _footprint(cand) <= budget):
                    tile = cand
                    break

    grid_steps = _cdiv(R, tile)
    R_pad = grid_steps * tile  # inputs are NOT padded: a ragged last block is
                               # handled by Pallas' masked boundary DMA; the
                               # garbage rows only yield garbage output rows
                               # that are sliced away below.
    pack_out = (tile * F_out) % 1024 == 0

    need = _footprint(tile)
    vmem_limit = None
    if need > (14 << 20):
        vmem_limit = int(min(max(need * 5 // 4, need + (2 << 20)), 48 << 20))

    row_spec = lambda f: pl.BlockSpec((tile, f), lambda i: (i, 0))

    def _call(pack, single_buffer_consts):
        if single_buffer_consts:
            const_spec = lambda a: pl.BlockSpec(a.shape, lambda i: (0, 0),
                                                pipeline_mode=pl.Buffered(1))
        else:
            const_spec = lambda a: pl.BlockSpec(a.shape, lambda i: (0, 0))
        if pack:
            oshape = (R_pad * F_out // 128, 128)
            oblock = (tile * F_out // 128, 128)
        else:
            oshape = (R_pad, F_out)
            oblock = (tile, F_out)
        cp = dict(dimension_semantics=("parallel",))
        if vmem_limit is not None:
            cp["vmem_limit_bytes"] = vmem_limit
        return pl.pallas_call(
            functools.partial(_vrnn_proposal_kernel, z_dim=z_dim),
            out_shape=jax.ShapeDtypeStruct(oshape, jnp.float32),
            grid_spec=pltpu.PrefetchScalarGridSpec(
                num_scalar_prefetch=0,
                grid=(grid_steps,),
                in_specs=[row_spec(obs_dim), row_spec(h_dim), row_spec(act_dim),
                          const_spec(w1o), const_spec(w1h), const_spec(w1a),
                          const_spec(b1), const_spec(wh), const_spec(bh)],
                out_specs=pl.BlockSpec(oblock, lambda i: (i, 0)),
            ),
            compiler_params=pltpu.CompilerParams(**cp),
        )(obs2, h2, act2, w1o, w1h, w1a, b1, wh, bh)

    # Preferred config first (packed output, single-buffered constants);
    # degrade gracefully if a jaxlib rejects the packed-store reshape or
    # pipeline_mode=pl.Buffered(1).  (pallas_call compiles eagerly here, so a
    # lowering failure surfaces as a catchable exception.)
    configs = [(pack_out, True), (pack_out, False)]
    if pack_out:
        configs += [(False, True), (False, False)]
    out, pack_used, errs = None, False, []
    for pk, sb in configs:
        try:
            out = _call(pk, sb)
            pack_used = pk
            break
        except Exception as e:  # pragma: no cover - lowering-support fallback
            errs.append(e)
    if out is None:
        raise errs[-1]

    out2 = out.reshape(R_pad, F_out) if pack_used else out
    mean = out2[:R, :z_dim].reshape(B, P, z_dim)
    std = out2[:R, z_dim:].reshape(B, P, z_dim)
    return mean, std


def init_params(key, z_dim, h_dim, obs_dim, act_dim):
    """Deterministic init matching nn.Linear shapes (stored transposed:
    W has shape (in, out) so the kernel computes x @ W + b)."""
    d_in = h_dim + obs_dim + act_dim
    k1, k2, k3, k4, k5, k6 = jax.random.split(key, 6)

    def lin(kw, kb, fan_in, fan_out):
        bound = 1.0 / jnp.sqrt(fan_in)
        w = jax.random.uniform(kw, (fan_in, fan_out), jnp.float32, -bound, bound)
        b = jax.random.uniform(kb, (1, fan_out), jnp.float32, -bound, bound)
        return w, b

    w1, b1 = lin(k1, k2, d_in, h_dim)
    wm, bm = lin(k3, k4, h_dim, z_dim)
    ws, bs = lin(k5, k6, h_dim, z_dim)
    return {"w1": w1, "b1": b1, "wm": wm, "bm": bm, "ws": ws, "bs": bs}


def _reference_f32(obs, h, act, params):
    # Exact PyTorch-module semantics in f32.
    B, P, _ = obs.shape
    x = jnp.concatenate([obs, h, act], axis=2).reshape(B * P, -1)
    enc = jax.nn.relu(x @ params["w1"] + params["b1"])
    mean = (enc @ params["wm"] + params["bm"]).reshape(B, P, -1)
    std = jax.nn.softplus(enc @ params["ws"] + params["bs"]).reshape(B, P, -1)
    return mean, std


def _reference_mixed(obs, h, act, params, compute_dtype):
    # Mirrors the kernel's dtype path: bf16 operands, f32 accumulation,
    # f32 bias / ReLU / softplus.
    B, P, obs_dim = obs.shape
    h_dim = h.shape[-1]
    z_dim = params["bm"].shape[-1]
    cd = compute_dtype
    R = B * P
    obs2 = obs.reshape(R, -1).astype(cd)
    h2 = h.reshape(R, -1).astype(cd)
    act2 = act.reshape(R, -1).astype(cd)
    w1 = params["w1"].astype(cd)
    w1o, w1h, w1a = (w1[:obs_dim], w1[obs_dim:obs_dim + h_dim],
                     w1[obs_dim + h_dim:])
    enc = (jnp.dot(obs2, w1o, preferred_element_type=jnp.float32)
           + jnp.dot(h2, w1h, preferred_element_type=jnp.float32)
           + jnp.dot(act2, w1a, preferred_element_type=jnp.float32)
           + params["b1"].astype(jnp.float32))
    enc = jax.nn.relu(enc).astype(cd)
    wh = jnp.concatenate([params["wm"], params["ws"]], axis=1).astype(cd)
    bh = jnp.concatenate([params["bm"], params["bs"]],
                         axis=1).astype(jnp.float32)
    heads = jnp.dot(enc, wh, preferred_element_type=jnp.float32) + bh
    mean = heads[:, :z_dim].reshape(B, P, z_dim)
    std = jax.nn.softplus(heads[:, z_dim:]).reshape(B, P, z_dim)
    return mean, std


def _check(batch, num_particles, z_dim, h_dim, obs_dim, act_dim, seed=0):
    key = jax.random.PRNGKey(seed)
    k_obs, k_h, k_act, k_par = jax.random.split(key, 4)
    obs = jax.random.normal(k_obs, (batch, num_particles, obs_dim), jnp.float32)
    prev_h = jax.random.normal(k_h, (batch, num_particles, h_dim), jnp.float32)
    act = jax.random.normal(k_act, (batch, num_particles, act_dim), jnp.float32)
    params = init_params(k_par, z_dim, h_dim, obs_dim, act_dim)

    # 1) Strict check: f32 compute path vs exact f32 reference.
    mean32, std32 = vrnn_proposal_forward(obs, prev_h, act, params,
                                          compute_dtype=jnp.float32)
    jax.block_until_ready((mean32, std32))
    ref_mean, ref_std = _reference_f32(obs, prev_h, act, params)
    assert mean32.shape == (batch, num_particles, z_dim)
    assert std32.shape == (batch, num_particles, z_dim)
    assert jnp.allclose(mean32, ref_mean, atol=1e-4, rtol=1e-4)
    assert jnp.allclose(std32, ref_std, atol=1e-4, rtol=1e-4)

    # 2) Default (bf16 operands, f32 accumulation) vs a mixed-precision ref.
    mean_bf, std_bf = vrnn_proposal_forward(obs, prev_h, act, params)
    jax.block_until_ready((mean_bf, std_bf))
    ref_mean_bf, ref_std_bf = _reference_mixed(obs, prev_h, act, params,
                                               jnp.bfloat16)
    assert jnp.allclose(mean_bf, ref_mean_bf, atol=2e-2, rtol=2e-2)
    assert jnp.allclose(std_bf, ref_std_bf, atol=2e-2, rtol=2e-2)
    assert bool(jnp.all(std_bf > 0.0))


if __name__ == "__main__":
    # Small shapes consistent with the module's forward signature.
    _check(batch=2, num_particles=4, z_dim=8, h_dim=32, obs_dim=16, act_dim=8)
    # Moderate shape that exercises the optimized path: R = 4096 rows ->
    # tile 2048, grid 2, lane-dense packed (512, 128) f32 output.
    _check(batch=8, num_particles=512, z_dim=8, h_dim=32, obs_dim=16, act_dim=8)
    print("KERNEL_OK")
</pallas_src>

<mosaic_0001>
module attributes {stable_mosaic.version = 11 : i64} {
  func.func @_vrnn_proposal_kernel(%arg0: i32, %arg1: memref<8x16xf32, #tpu.memory_space<vmem>>, %arg2: memref<8x32xf32, #tpu.memory_space<vmem>>, %arg3: memref<8x8xf32, #tpu.memory_space<vmem>>, %arg4: memref<16x32xf32, #tpu.memory_space<vmem>>, %arg5: memref<32x32xf32, #tpu.memory_space<vmem>>, %arg6: memref<8x32xf32, #tpu.memory_space<vmem>>, %arg7: memref<1x32xf32, #tpu.memory_space<vmem>>, %arg8: memref<32x16xf32, #tpu.memory_space<vmem>>, %arg9: memref<1x16xf32, #tpu.memory_space<vmem>>, %arg10: memref<8x16xf32, #tpu.memory_space<vmem>>) attributes {dimension_semantics = [#tpu.dimension_semantics<parallel>], iteration_bounds = array<i64: 1>, scalar_prefetch = 0 : i64, scratch_operands = 0 : i64, tpu.core_type = #tpu.core_type<tc>, window_params = [{transform_indices = @transform_0, window_bounds = array<i64: 8, 16>}, {transform_indices = @transform_1, window_bounds = array<i64: 8, 32>}, {transform_indices = @transform_2, window_bounds = array<i64: 8, 8>}, {pipeline_mode = #tpu.pipeline_mode<synchronous>, transform_indices = @transform_3, window_bounds = array<i64: 16, 32>}, {pipeline_mode = #tpu.pipeline_mode<synchronous>, transform_indices = @transform_4, window_bounds = array<i64: 32, 32>}, {pipeline_mode = #tpu.pipeline_mode<synchronous>, transform_indices = @transform_5, window_bounds = array<i64: 8, 32>}, {pipeline_mode = #tpu.pipeline_mode<synchronous>, transform_indices = @transform_6, window_bounds = array<i64: 1, 32>}, {pipeline_mode = #tpu.pipeline_mode<synchronous>, transform_indices = @transform_7, window_bounds = array<i64: 32, 16>}, {pipeline_mode = #tpu.pipeline_mode<synchronous>, transform_indices = @transform_8, window_bounds = array<i64: 1, 16>}, {transform_indices = @transform_9, window_bounds = array<i64: 8, 16>}]} {
    %c0 = arith.constant 0 : index
    %c0_0 = arith.constant 0 : index
    %0 = vector.load %arg1[%c0, %c0_0] : memref<8x16xf32, #tpu.memory_space<vmem>>, vector<8x16xf32>
    %c0_1 = arith.constant 0 : index
    %c0_2 = arith.constant 0 : index
    %1 = vector.load %arg4[%c0_1, %c0_2] : memref<16x32xf32, #tpu.memory_space<vmem>>, vector<16x32xf32>
    %cst = arith.constant dense<0.000000e+00> : vector<8x32xf32>
    %2 = tpu.matmul %0, %1, %cst {dimension_numbers = #tpu.dot_dimension_numbers<[1], [0], [0], [1], [0, 0, 1, 1], [], []>} : vector<8x16xf32>, vector<16x32xf32>, vector<8x32xf32> -> vector<8x32xf32>
    %c0_3 = arith.constant 0 : index
    %c0_4 = arith.constant 0 : index
    %3 = vector.load %arg2[%c0_3, %c0_4] : memref<8x32xf32, #tpu.memory_space<vmem>>, vector<8x32xf32>
    %c0_5 = arith.constant 0 : index
    %c0_6 = arith.constant 0 : index
    %4 = vector.load %arg5[%c0_5, %c0_6] : memref<32x32xf32, #tpu.memory_space<vmem>>, vector<32x32xf32>
    %cst_7 = arith.constant dense<0.000000e+00> : vector<8x32xf32>
    %5 = tpu.matmul %3, %4, %cst_7 {dimension_numbers = #tpu.dot_dimension_numbers<[1], [0], [0], [1], [0, 0, 1, 1], [], []>} : vector<8x32xf32>, vector<32x32xf32>, vector<8x32xf32> -> vector<8x32xf32>
    %6 = arith.addf %2, %5 : vector<8x32xf32>
    %c0_8 = arith.constant 0 : index
    %c0_9 = arith.constant 0 : index
    %7 = vector.load %arg3[%c0_8, %c0_9] : memref<8x8xf32, #tpu.memory_space<vmem>>, vector<8x8xf32>
    %c0_10 = arith.constant 0 : index
    %c0_11 = arith.constant 0 : index
    %8 = vector.load %arg6[%c0_10, %c0_11] : memref<8x32xf32, #tpu.memory_space<vmem>>, vector<8x32xf32>
    %cst_12 = arith.constant dense<0.000000e+00> : vector<8x32xf32>
    %9 = tpu.matmul %7, %8, %cst_12 {dimension_numbers = #tpu.dot_dimension_numbers<[1], [0], [0], [1], [0, 0, 1, 1], [], []>} : vector<8x8xf32>, vector<8x32xf32>, vector<8x32xf32> -> vector<8x32xf32>
    %10 = arith.addf %6, %9 : vector<8x32xf32>
    %c0_13 = arith.constant 0 : index
    %c0_14 = arith.constant 0 : index
    %11 = vector.load %arg7[%c0_13, %c0_14] : memref<1x32xf32, #tpu.memory_space<vmem>>, vector<1x32xf32>
    %12 = vector.broadcast %11 : vector<1x32xf32> to vector<8x32xf32>
    %13 = arith.addf %10, %12 : vector<8x32xf32>
    %cst_15 = arith.constant 0.000000e+00 : f32
    %14 = vector.broadcast %cst_15 : f32 to vector<8x32xf32>
    %15 = arith.maximumf %13, %14 : vector<8x32xf32>
    %c0_16 = arith.constant 0 : index
    %c0_17 = arith.constant 0 : index
    %16 = vector.load %arg8[%c0_16, %c0_17] : memref<32x16xf32, #tpu.memory_space<vmem>>, vector<32x16xf32>
    %cst_18 = arith.constant dense<0.000000e+00> : vector<8x16xf32>
    %17 = tpu.matmul %15, %16, %cst_18 {dimension_numbers = #tpu.dot_dimension_numbers<[1], [0], [0], [1], [0, 0, 1, 1], [], []>} : vector<8x32xf32>, vector<32x16xf32>, vector<8x16xf32> -> vector<8x16xf32>
    %c0_19 = arith.constant 0 : index
    %c0_20 = arith.constant 0 : index
    %18 = vector.load %arg9[%c0_19, %c0_20] : memref<1x16xf32, #tpu.memory_space<vmem>>, vector<1x16xf32>
    %19 = vector.broadcast %18 : vector<1x16xf32> to vector<8x16xf32>
    %20 = arith.addf %17, %19 : vector<8x16xf32>
    %cst_21 = arith.constant 0.000000e+00 : f32
    %21 = vector.broadcast %cst_21 : f32 to vector<8x16xf32>
    %22 = arith.maximumf %20, %21 : vector<8x16xf32>
    %23 = math.absf %20 : vector<8x16xf32>
    %cst_22 = arith.constant 0.000000e+00 : f32
    %24 = vector.broadcast %cst_22 : f32 to vector<8x16xf32>
    %25 = arith.subf %24, %23 : vector<8x16xf32>
    %26 = math.exp %25 : vector<8x16xf32>
    %27 = math.log1p %26 : vector<8x16xf32>
    %28 = arith.addf %22, %27 : vector<8x16xf32>
    %29 = tpu.iota {dimensions = array<i32: 1>} : vector<8x16xi32>
    %c8_i32 = arith.constant 8 : i32
    %30 = vector.broadcast %c8_i32 : i32 to vector<8x16xi32>
    %31 = arith.cmpi slt, %29, %30 : vector<8x16xi32>
    %32 = arith.select %31, %20, %28 : vector<8x16xi1>, vector<8x16xf32>
    %c0_23 = arith.constant 0 : index
    %c0_24 = arith.constant 0 : index
    %33 = vector.load %arg10[%c0_23, %c0_24] : memref<8x16xf32, #tpu.memory_space<vmem>>, vector<8x16xf32>
    tpu.vector_store %arg10[%c0_23, %c0_24], %32 {strides = array<i32>} : memref<8x16xf32, #tpu.memory_space<vmem>>, vector<8x16xf32>,
    return
  }
  func.func @transform_0(%arg0: i32) -> (i32, i32) {
    %c0_i32 = arith.constant 0 : i32
    %c0_i32_0 = arith.constant 0 : i32
    return %arg0, %c0_i32 : i32, i32
  }
  func.func @transform_1(%arg0: i32) -> (i32, i32) {
    %c0_i32 = arith.constant 0 : i32
    %c0_i32_0 = arith.constant 0 : i32
    return %arg0, %c0_i32 : i32, i32
  }
  func.func @transform_2(%arg0: i32) -> (i32, i32) {
    %c0_i32 = arith.constant 0 : i32
    %c0_i32_0 = arith.constant 0 : i32
    return %arg0, %c0_i32 : i32, i32
  }
  func.func @transform_3(%arg0: i32) -> (i32, i32) {
    %c0_i32 = arith.constant 0 : i32
    %c0_i32_0 = arith.constant 0 : i32
    %c0_i32_1 = arith.constant 0 : i32
    return %c0_i32, %c0_i32_0 : i32, i32
  }
  func.func @transform_4(%arg0: i32) -> (i32, i32) {
    %c0_i32 = arith.constant 0 : i32
    %c0_i32_0 = arith.constant 0 : i32
    %c0_i32_1 = arith.constant 0 : i32
    return %c0_i32, %c0_i32_0 : i32, i32
  }
  func.func @transform_5(%arg0: i32) -> (i32, i32) {
    %c0_i32 = arith.constant 0 : i32
    %c0_i32_0 = arith.constant 0 : i32
    %c0_i32_1 = arith.constant 0 : i32
    return %c0_i32, %c0_i32_0 : i32, i32
  }
  func.func @transform_6(%arg0: i32) -> (i32, i32) {
    %c0_i32 = arith.constant 0 : i32
    %c0_i32_0 = arith.constant 0 : i32
    %c0_i32_1 = arith.constant 0 : i32
    return %c0_i32, %c0_i32_0 : i32, i32
  }
  func.func @transform_7(%arg0: i32) -> (i32, i32) {
    %c0_i32 = arith.constant 0 : i32
    %c0_i32_0 = arith.constant 0 : i32
    %c0_i32_1 = arith.constant 0 : i32
    return %c0_i32, %c0_i32_0 : i32, i32
  }
  func.func @transform_8(%arg0: i32) -> (i32, i32) {
    %c0_i32 = arith.constant 0 : i32
    %c0_i32_0 = arith.constant 0 : i32
    %c0_i32_1 = arith.constant 0 : i32
    return %c0_i32, %c0_i32_0 : i32, i32
  }
  func.func @transform_9(%arg0: i32) -> (i32, i32) {
    %c0_i32 = arith.constant 0 : i32
    %c0_i32_0 = arith.constant 0 : i32
    return %arg0, %c0_i32 : i32, i32
  }
}

module attributes {stable_mosaic.version = 11 : i64} {
  func.func @_vrnn_proposal_kernel(%arg0: i32, %arg1: memref<8x16xf32, #tpu.memory_space<vmem>>, %arg2: memref<8x32xf32, #tpu.memory_space<vmem>>, %arg3: memref<8x8xf32, #tpu.memory_space<vmem>>, %arg4: memref<16x32xf32, #tpu.memory_space<vmem>>, %arg5: memref<32x32xf32, #tpu.memory_space<vmem>>, %arg6: memref<8x32xf32, #tpu.memory_space<vmem>>, %arg7: memref<1x32xf32, #tpu.memory_space<vmem>>, %arg8: memref<32x16xf32, #tpu.memory_space<vmem>>, %arg9: memref<1x16xf32, #tpu.memory_space<vmem>>, %arg10: memref<8x16xf32, #tpu.memory_space<vmem>>) attributes {dimension_semantics = [#tpu.dimension_semantics<parallel>], iteration_bounds = array<i64: 1>, scalar_prefetch = 0 : i64, scratch_operands = 0 : i64, tpu.core_type = #tpu.core_type<tc>, window_params = [{transform_indices = @transform_0, window_bounds = array<i64: 8, 16>}, {transform_indices = @transform_1, window_bounds = array<i64: 8, 32>}, {transform_indices = @transform_2, window_bounds = array<i64: 8, 8>}, {pipeline_mode = #tpu.pipeline_mode<synchronous>, transform_indices = @transform_3, window_bounds = array<i64: 16, 32>}, {pipeline_mode = #tpu.pipeline_mode<synchronous>, transform_indices = @transform_4, window_bounds = array<i64: 32, 32>}, {pipeline_mode = #tpu.pipeline_mode<synchronous>, transform_indices = @transform_5, window_bounds = array<i64: 8, 32>}, {pipeline_mode = #tpu.pipeline_mode<synchronous>, transform_indices = @transform_6, window_bounds = array<i64: 1, 32>}, {pipeline_mode = #tpu.pipeline_mode<synchronous>, transform_indices = @transform_7, window_bounds = array<i64: 32, 16>}, {pipeline_mode = #tpu.pipeline_mode<synchronous>, transform_indices = @transform_8, window_bounds = array<i64: 1, 16>}, {transform_indices = @transform_9, window_bounds = array<i64: 8, 16>}]} {
    %c0 = arith.constant 0 : index
    %c0_0 = arith.constant 0 : index
    %0 = vector.load %arg1[%c0, %c0_0] : memref<8x16xf32, #tpu.memory_space<vmem>>, vector<8x16xf32>
    %c0_1 = arith.constant 0 : index
    %c0_2 = arith.constant 0 : index
    %1 = vector.load %arg4[%c0_1, %c0_2] : memref<16x32xf32, #tpu.memory_space<vmem>>, vector<16x32xf32>
    %cst = arith.constant dense<0.000000e+00> : vector<8x32xf32>
    %2 = tpu.matmul %0, %1, %cst {dimension_numbers = #tpu.dot_dimension_numbers<[1], [0], [0], [1], [0, 0, 1, 1], [], []>} : vector<8x16xf32>, vector<16x32xf32>, vector<8x32xf32> -> vector<8x32xf32>
    %c0_3 = arith.constant 0 : index
    %c0_4 = arith.constant 0 : index
    %3 = vector.load %arg2[%c0_3, %c0_4] : memref<8x32xf32, #tpu.memory_space<vmem>>, vector<8x32xf32>
    %c0_5 = arith.constant 0 : index
    %c0_6 = arith.constant 0 : index
    %4 = vector.load %arg5[%c0_5, %c0_6] : memref<32x32xf32, #tpu.memory_space<vmem>>, vector<32x32xf32>
    %cst_7 = arith.constant dense<0.000000e+00> : vector<8x32xf32>
    %5 = tpu.matmul %3, %4, %cst_7 {dimension_numbers = #tpu.dot_dimension_numbers<[1], [0], [0], [1], [0, 0, 1, 1], [], []>} : vector<8x32xf32>, vector<32x32xf32>, vector<8x32xf32> -> vector<8x32xf32>
    %6 = arith.addf %2, %5 : vector<8x32xf32>
    %c0_8 = arith.constant 0 : index
    %c0_9 = arith.constant 0 : index
    %7 = vector.load %arg3[%c0_8, %c0_9] : memref<8x8xf32, #tpu.memory_space<vmem>>, vector<8x8xf32>
    %c0_10 = arith.constant 0 : index
    %c0_11 = arith.constant 0 : index
    %8 = vector.load %arg6[%c0_10, %c0_11] : memref<8x32xf32, #tpu.memory_space<vmem>>, vector<8x32xf32>
    %cst_12 = arith.constant dense<0.000000e+00> : vector<8x32xf32>
    %9 = tpu.matmul %7, %8, %cst_12 {dimension_numbers = #tpu.dot_dimension_numbers<[1], [0], [0], [1], [0, 0, 1, 1], [], []>} : vector<8x8xf32>, vector<8x32xf32>, vector<8x32xf32> -> vector<8x32xf32>
    %10 = arith.addf %6, %9 : vector<8x32xf32>
    %c0_13 = arith.constant 0 : index
    %c0_14 = arith.constant 0 : index
    %11 = vector.load %arg7[%c0_13, %c0_14] : memref<1x32xf32, #tpu.memory_space<vmem>>, vector<1x32xf32>
    %12 = vector.broadcast %11 : vector<1x32xf32> to vector<8x32xf32>
    %13 = arith.addf %10, %12 : vector<8x32xf32>
    %cst_15 = arith.constant 0.000000e+00 : f32
    %14 = vector.broadcast %cst_15 : f32 to vector<8x32xf32>
    %15 = arith.maximumf %13, %14 : vector<8x32xf32>
    %c0_16 = arith.constant 0 : index
    %c0_17 = arith.constant 0 : index
    %16 = vector.load %arg8[%c0_16, %c0_17] : memref<32x16xf32, #tpu.memory_space<vmem>>, vector<32x16xf32>
    %cst_18 = arith.constant dense<0.000000e+00> : vector<8x16xf32>
    %17 = tpu.matmul %15, %16, %cst_18 {dimension_numbers = #tpu.dot_dimension_numbers<[1], [0], [0], [1], [0, 0, 1, 1], [], []>} : vector<8x32xf32>, vector<32x16xf32>, vector<8x16xf32> -> vector<8x16xf32>
    %c0_19 = arith.constant 0 : index
    %c0_20 = arith.constant 0 : index
    %18 = vector.load %arg9[%c0_19, %c0_20] : memref<1x16xf32, #tpu.memory_space<vmem>>, vector<1x16xf32>
    %19 = vector.broadcast %18 : vector<1x16xf32> to vector<8x16xf32>
    %20 = arith.addf %17, %19 : vector<8x16xf32>
    %cst_21 = arith.constant 0.000000e+00 : f32
    %21 = vector.broadcast %cst_21 : f32 to vector<8x16xf32>
    %22 = arith.maximumf %20, %21 : vector<8x16xf32>
    %23 = math.absf %20 : vector<8x16xf32>
    %cst_22 = arith.constant 0.000000e+00 : f32
    %24 = vector.broadcast %cst_22 : f32 to vector<8x16xf32>
    %25 = arith.subf %24, %23 : vector<8x16xf32>
    %26 = math.exp %25 : vector<8x16xf32>
    %27 = math.log1p %26 : vector<8x16xf32>
    %28 = arith.addf %22, %27 : vector<8x16xf32>
    %29 = tpu.iota {dimensions = array<i32: 1>} : vector<8x16xi32>
    %c8_i32 = arith.constant 8 : i32
    %30 = vector.broadcast %c8_i32 : i32 to vector<8x16xi32>
    %31 = arith.cmpi slt, %29, %30 : vector<8x16xi32>
    %32 = arith.select %31, %20, %28 : vector<8x16xi1>, vector<8x16xf32>
    %c0_23 = arith.constant 0 : index
    %c0_24 = arith.constant 0 : index
    %33 = vector.load %arg10[%c0_23, %c0_24] : memref<8x16xf32, #tpu.memory_space<vmem>>, vector<8x16xf32>
    tpu.vector_store %arg10[%c0_23, %c0_24], %32 {strides = array<i32>} : memref<8x16xf32, #tpu.memory_space<vmem>>, vector<8x16xf32>,
    return
  }
  func.func @transform_0(%arg0: i32) -> (i32, i32) {
    %c0_i32 = arith.constant 0 : i32
    %c0_i32_0 = arith.constant 0 : i32
    return %arg0, %c0_i32 : i32, i32
  }
  func.func @transform_1(%arg0: i32) -> (i32, i32) {
    %c0_i32 = arith.constant 0 : i32
    %c0_i32_0 = arith.constant 0 : i32
    return %arg0, %c0_i32 : i32, i32
  }
  func.func @transform_2(%arg0: i32) -> (i32, i32) {
    %c0_i32 = arith.constant 0 : i32
    %c0_i32_0 = arith.constant 0 : i32
    return %arg0, %c0_i32 : i32, i32
  }
  func.func @transform_3(%arg0: i32) -> (i32, i32) {
    %c0_i32 = arith.constant 0 : i32
    %c0_i32_0 = arith.constant 0 : i32
    %c0_i32_1 = arith.constant 0 : i32
    return %c0_i32, %c0_i32_0 : i32, i32
  }
  func.func @transform_4(%arg0: i32) -> (i32, i32) {
    %c0_i32 = arith.constant 0 : i32
    %c0_i32_0 = arith.constant 0 : i32
    %c0_i32_1 = arith.constant 0 : i32
    return %c0_i32, %c0_i32_0 : i32, i32
  }
  func.func @transform_5(%arg0: i32) -> (i32, i32) {
    %c0_i32 = arith.constant 0 : i32
    %c0_i32_0 = arith.constant 0 : i32
    %c0_i32_1 = arith.constant 0 : i32
    return %c0_i32, %c0_i32_0 : i32, i32
  }
  func.func @transform_6(%arg0: i32) -> (i32, i32) {
    %c0_i32 = arith.constant 0 : i32
    %c0_i32_0 = arith.constant 0 : i32
    %c0_i32_1 = arith.constant 0 : i32
    return %c0_i32, %c0_i32_0 : i32, i32
  }
  func.func @transform_7(%arg0: i32) -> (i32, i32) {
    %c0_i32 = arith.constant 0 : i32
    %c0_i32_0 = arith.constant 0 : i32
    %c0_i32_1 = arith.constant 0 : i32
    return %c0_i32, %c0_i32_0 : i32, i32
  }
  func.func @transform_8(%arg0: i32) -> (i32, i32) {
    %c0_i32 = arith.constant 0 : i32
    %c0_i32_0 = arith.constant 0 : i32
    %c0_i32_1 = arith.constant 0 : i32
    return %c0_i32, %c0_i32_0 : i32, i32
  }
  func.func @transform_9(%arg0: i32) -> (i32, i32) {
    %c0_i32 = arith.constant 0 : i32
    %c0_i32_0 = arith.constant 0 : i32
    return %arg0, %c0_i32 : i32, i32
  }
}

</mosaic_0001>

<llo_original>
// kernel: tpu_custom_call.1
$region0: #{tpu_custom_call.1}
  #allocation0 [shape = 'u32[]', space=smem, size = 0x4, offset = 0x4, fixed_abs, tag = 'smem constant byte address 0x4 - core index']
  #allocation1 [shape = 'u32[72,128]{1,0:T(1,128)}', space=vmem, size = 0x9000, scoped, tag = 'internal scratch']
  %s0 = inlined_call_operand.hbm [shape: f32[8,16], index: 0, kind: input, shape index: {}]
  %s1 = inlined_call_operand.hbm [shape: f32[8,32], index: 1, kind: input, shape index: {}]
  %s2 = inlined_call_operand.hbm [shape: f32[8,8], index: 2, kind: input, shape index: {}]
  %s3 = inlined_call_operand.vmem [shape: f32[16,32], index: 3, kind: input, shape index: {}]
  %s4 = inlined_call_operand.vmem [shape: f32[32,32], index: 4, kind: input, shape index: {}]
  %s5 = inlined_call_operand.hbm [shape: f32[8,32], index: 5, kind: input, shape index: {}]
  %s6 = inlined_call_operand.vmem [shape: f32[1,32], index: 6, kind: input, shape index: {}]
  %s7 = inlined_call_operand.vmem [shape: f32[32,16], index: 7, kind: input, shape index: {}]
  %s8 = inlined_call_operand.vmem [shape: f32[1,16], index: 8, kind: input, shape index: {}]
  %s9 = inlined_call_operand.hbm [shape: f32[8,16], index: 9, kind: output, shape index: {}]
  %s10 = sld [smem:[#allocation0]]
  $region62: #{tpu_custom_call.1} parent=0
    _
  %s12 = ssub.s32 1, %s10
  %s13 = scalar_select 0, %s12, %s10
  $region1: #{tpu_custom_call.1} parent=0
    #allocation2 [shape = 'u8[4096]{0}', space=vmem, size = 0x1000, scoped, tag = 'input window, operand 0, single buffered']
    #allocation3 [shape = 's32[1]{0}', space=sflag, size = 0x4, scoped, tag = 'scoped memory for tpu_custom_call.1']
    #allocation4 [shape = 's32[1]{0}', space=sflag, size = 0x4, scoped, tag = 'scoped memory for tpu_custom_call.1']
    #allocation5 [shape = 'u8[4096]{0}', space=vmem, size = 0x1000, scoped, tag = 'input window, operand 1, single buffered']
    #allocation6 [shape = 's32[1]{0}', space=sflag, size = 0x4, scoped, tag = 'scoped memory for tpu_custom_call.1']
    #allocation7 [shape = 'u8[4096]{0}', space=vmem, size = 0x1000, scoped, tag = 'input window, operand 2, single buffered']
    #allocation8 [shape = 'u8[4096]{0}', space=vmem, size = 0x1000, scoped, tag = 'input window, operand 5, single buffered']
    #allocation9 [shape = 's32[1]{0}', space=sflag, size = 0x4, scoped, tag = 'scoped memory for tpu_custom_call.1']
    #allocation10 [shape = 'u8[4096]{0}', space=vmem, size = 0x1000, scoped, tag = 'output window, operand 0, single buffered']
    %14 = vsyncpa [#allocation3], 0
    %15 = vsyncpa [#allocation6], 0
    %16 = vsyncpa [#allocation9], 0
    %17 = vsyncpa [#allocation4], 0
    // Predicated region
    $region2: #{tpu_custom_call.1} parent=1 // pred_check
      _
    $region3: #{tpu_custom_call.1} parent=1 // pred_check_branch
      %19 = sbr.rel (0) target = $region5
    $region4: #{tpu_custom_call.1} parent=1 // pred_region
      %21 = vsyncadd [#allocation3], 0
      %s23 = sshll.u32 %s0, 4
      %s24 = int_to_ptr.hbm [resolvable:$true] %s23
      %s25 = sshll.u32 [#allocation2], 4
      %s26 = int_to_ptr.vmem [resolvable:$true] %s25
      %28 = dma.hbm_to_vmem [thread:$0]  %s24, 128, %s26, [#allocation3]
    $region5: #{tpu_custom_call.1} parent=1 // pred_fallthru
      _
    // Predicated region
    $region6: #{tpu_custom_call.1} parent=1 // pred_check
      _
    $region7: #{tpu_custom_call.1} parent=1 // pred_check_branch
      %30 = sbr.rel (0) target = $region9
    $region8: #{tpu_custom_call.1} parent=1 // pred_region
      %32 = vsyncadd [#allocation6], 0
      %s34 = sshll.u32 %s1, 4
      %s35 = int_to_ptr.hbm [resolvable:$true] %s34
      %s36 = sshll.u32 [#allocation5], 4
      %s37 = int_to_ptr.vmem [resolvable:$true] %s36
      %39 = dma.hbm_to_vmem [thread:$0]  %s35, 128, %s37, [#allocation6]
    $region9: #{tpu_custom_call.1} parent=1 // pred_fallthru
      _
    // Predicated region
    $region10: #{tpu_custom_call.1} parent=1 // pred_check
      _
    $region11: #{tpu_custom_call.1} parent=1 // pred_check_branch
      %41 = sbr.rel (0) target = $region13
    $region12: #{tpu_custom_call.1} parent=1 // pred_region
      %43 = vsyncadd [#allocation6], 0
      %s45 = sshll.u32 %s2, 4
      %s46 = int_to_ptr.hbm [resolvable:$true] %s45
      %s47 = sshll.u32 [#allocation7], 4
      %s48 = int_to_ptr.vmem [resolvable:$true] %s47
      %50 = dma.hbm_to_vmem [thread:$0]  %s46, 128, %s48, [#allocation6]
    $region13: #{tpu_custom_call.1} parent=1 // pred_fallthru
      _
    // Predicated region
    $region14: #{tpu_custom_call.1} parent=1 // pred_check
      _
    $region15: #{tpu_custom_call.1} parent=1 // pred_check_branch
      %52 = sbr.rel (0) target = $region17
    $region16: #{tpu_custom_call.1} parent=1 // pred_region
      _
    $region17: #{tpu_custom_call.1} parent=1 // pred_fallthru
      _
    // Predicated region
    $region18: #{tpu_custom_call.1} parent=1 // pred_check
      _
    $region19: #{tpu_custom_call.1} parent=1 // pred_check_branch
      %54 = sbr.rel (0) target = $region21
    $region20: #{tpu_custom_call.1} parent=1 // pred_region
      _
    $region21: #{tpu_custom_call.1} parent=1 // pred_fallthru
      _
    // Predicated region
    $region22: #{tpu_custom_call.1} parent=1 // pred_check
      _
    $region23: #{tpu_custom_call.1} parent=1 // pred_check_branch
      %56 = sbr.rel (0) target = $region25
    $region24: #{tpu_custom_call.1} parent=1 // pred_region
      %58 = vsyncadd [#allocation9], 0
      %s60 = sshll.u32 %s5, 4
      %s61 = int_to_ptr.hbm [resolvable:$true] %s60
      %s62 = sshll.u32 [#allocation8], 4
      %s63 = int_to_ptr.vmem [resolvable:$true] %s62
      %65 = dma.hbm_to_vmem [thread:$0]  %s61, 128, %s63, [#allocation9]
    $region25: #{tpu_custom_call.1} parent=1 // pred_fallthru
      _
    // Predicated region
    $region26: #{tpu_custom_call.1} parent=1 // pred_check
      _
    $region27: #{tpu_custom_call.1} parent=1 // pred_check_branch
      %67 = sbr.rel (0) target = $region29
    $region28: #{tpu_custom_call.1} parent=1 // pred_region
      _
    $region29: #{tpu_custom_call.1} parent=1 // pred_fallthru
      _
    // Predicated region
    $region30: #{tpu_custom_call.1} parent=1 // pred_check
      _
    $region31: #{tpu_custom_call.1} parent=1 // pred_check_branch
      %69 = sbr.rel (0) target = $region33
    $region32: #{tpu_custom_call.1} parent=1 // pred_region
      _
    $region33: #{tpu_custom_call.1} parent=1 // pred_fallthru
      _
    // Predicated region
    $region34: #{tpu_custom_call.1} parent=1 // pred_check
      _
    $region35: #{tpu_custom_call.1} parent=1 // pred_check_branch
      %71 = sbr.rel (0) target = $region37
    $region36: #{tpu_custom_call.1} parent=1 // pred_region
      _
    $region37: #{tpu_custom_call.1} parent=1 // pred_fallthru
      _
    // Predicated region
    $region38: #{tpu_custom_call.1} parent=1 // pred_check
      _
    $region39: #{tpu_custom_call.1} parent=1 // pred_check_branch
      %73 = sbr.rel (0) target = $region41
    $region40: #{tpu_custom_call.1} parent=1 // pred_region
      %75 = dma.done [#allocation3], 128
    $region41: #{tpu_custom_call.1} parent=1 // pred_fallthru
      _
    // Predicated region
    $region42: #{tpu_custom_call.1} parent=1 // pred_check
      _
    $region43: #{tpu_custom_call.1} parent=1 // pred_check_branch
      %77 = sbr.rel (0) target = $region45
    $region44: #{tpu_custom_call.1} parent=1 // pred_region
      %79 = dma.done [#allocation6], 128
    $region45: #{tpu_custom_call.1} parent=1 // pred_fallthru
      _
    // Predicated region
    $region46: #{tpu_custom_call.1} parent=1 // pred_check
      _
    $region47: #{tpu_custom_call.1} parent=1 // pred_check_branch
      %81 = sbr.rel (0) target = $region49
    $region48: #{tpu_custom_call.1} parent=1 // pred_region
      %83 = dma.done [#allocation6], 128
    $region49: #{tpu_custom_call.1} parent=1 // pred_fallthru
      _
    // Predicated region
    $region50: #{tpu_custom_call.1} parent=1 // pred_check
      _
    $region51: #{tpu_custom_call.1} parent=1 // pred_check_branch
      %85 = sbr.rel (0) target = $region53
    $region52: #{tpu_custom_call.1} parent=1 // pred_region
      %87 = dma.done [#allocation9], 128
    $region53: #{tpu_custom_call.1} parent=1 // pred_fallthru
      _
    %v88 = vld [vmem:[#allocation2] sm:$0xff]
    %v89 = vld [vmem:[%s3] sm:$0xff]
    %v90 = vld [vmem:[%s3 + $0x8] sm:$0xff]
    %v91 = vld [vmem:[#allocation5] sm:$0xff]
    %v92 = vld [vmem:[%s4] sm:$0xff]
    %v93 = vld [vmem:[%s4 + $0x8] sm:$0xff]
    %v94 = vld [vmem:[%s4 + $0x10] sm:$0xff]
    %v95 = vld [vmem:[%s4 + $0x18] sm:$0xff]
    %vm96 = vcmask 261120
    %v98 = vsel %vm96, %v91, 0
    %100 = vmatpush.msra.mxu0 0.0
    %101 = vmatpush.msra.mxu0 0.0
    %102 = vmatpush.msra.mxu0 0.0
    %103 = vmatpush.msra.mxu0 0.0
    %104 = vmatpush.msra.mxu0 0.0
    %105 = vmatpush.msra.mxu0 0.0
    %106 = vmatpush.msra.mxu0 0.0
    %107 = vmatpush.msra.mxu0 0.0
    %108 = vmatpush.msra.mxu0 0.0
    %109 = vmatpush.msra.mxu0 0.0
    %110 = vmatpush.msra.mxu0 0.0
    %111 = vmatpush.msra.mxu0 0.0
    %112 = vmatpush.msra.mxu0 %v95
    %113 = vmatpush.msra.mxu0 %v94
    %114 = vmatpush.msra.mxu0 %v93
    %115 = vmatpush.msra.mxu0 %v92
    %116 = vmatmul.f32.gmra.mxu0 %v98
    %v117 = vpop.f32.mrf.mxu0
    %v118 = vadd.f32 0.0, %v117
    %119 = vdwg.mxu0
    %vm120 = vcmask 130048
    %v122 = vsel %vm120, %v88, 0
    %124 = vmatpush.msra.mxu0 0.0
    %125 = vmatpush.msra.mxu0 0.0
    %126 = vmatpush.msra.mxu0 0.0
    %127 = vmatpush.msra.mxu0 0.0
    %128 = vmatpush.msra.mxu0 0.0
    %129 = vmatpush.msra.mxu0 0.0
    %130 = vmatpush.msra.mxu0 0.0
    %131 = vmatpush.msra.mxu0 0.0
    %132 = vmatpush.msra.mxu0 0.0
    %133 = vmatpush.msra.mxu0 0.0
    %134 = vmatpush.msra.mxu0 0.0
    %135 = vmatpush.msra.mxu0 0.0
    %136 = vmatpush.msra.mxu0 0.0
    %137 = vmatpush.msra.mxu0 0.0
    %138 = vmatpush.msra.mxu0 %v90
    %139 = vmatpush.msra.mxu0 %v89
    %140 = vmatmul.f32.gmra.mxu0 %v122
    %v141 = vpop.f32.mrf.mxu0
    %v142 = vadd.f32 %v118, %v141
    %143 = vdwg.mxu0
    %v144 = vld [vmem:[#allocation7] sm:$0xff]
    %v145 = vld [vmem:[#allocation8] sm:$0xff]
    %vm146 = vcmask 64512
    %v148 = vsel %vm146, %v144, 0
    %150 = vmatpush.msra.mxu0 0.0
    %151 = vmatpush.msra.mxu0 0.0
    %152 = vmatpush.msra.mxu0 0.0
    %153 = vmatpush.msra.mxu0 0.0
    %154 = vmatpush.msra.mxu0 0.0
    %155 = vmatpush.msra.mxu0 0.0
    %156 = vmatpush.msra.mxu0 0.0
    %157 = vmatpush.msra.mxu0 0.0
    %158 = vmatpush.msra.mxu0 0.0
    %159 = vmatpush.msra.mxu0 0.0
    %160 = vmatpush.msra.mxu0 0.0
    %161 = vmatpush.msra.mxu0 0.0
    %162 = vmatpush.msra.mxu0 0.0
    %163 = vmatpush.msra.mxu0 0.0
    %164 = vmatpush.msra.mxu0 0.0
    %165 = vmatpush.msra.mxu0 %v145
    %166 = vmatmul.f32.gmra.mxu0 %v148
    %v167 = vpop.f32.mrf.mxu0
    %v168 = vadd.f32 0.0, %v167
    %169 = vdwg.mxu0
    %v170 = vadd.f32 %v142, %v168
    %v171 = vld [vmem:[%s6] sm:$0x1]
    %v173 = vperm.slane %v171, 0
    %v175 = vadd.f32 %v170, %v173
    %v176 = vmax.f32 %v175, 0.0
    %v177 = vld [vmem:[%s7] sm:$0xff]
    %v178 = vld [vmem:[%s7 + $0x8] sm:$0xff]
    %v179 = vld [vmem:[%s7 + $0x10] sm:$0xff]
    %v180 = vld [vmem:[%s7 + $0x18] sm:$0xff]
    %v181 = vld [vmem:[%s8] sm:$0x1]
    %v183 = vperm.slane %v181, 0
    %v186 = vsel %vm96, %v176, 0
    %188 = vmatpush.msra.mxu0 0.0
    %189 = vmatpush.msra.mxu0 0.0
    %190 = vmatpush.msra.mxu0 0.0
    %191 = vmatpush.msra.mxu0 0.0
    %192 = vmatpush.msra.mxu0 0.0
    %193 = vmatpush.msra.mxu0 0.0
    %194 = vmatpush.msra.mxu0 0.0
    %195 = vmatpush.msra.mxu0 0.0
    %196 = vmatpush.msra.mxu0 0.0
    %197 = vmatpush.msra.mxu0 0.0
    %198 = vmatpush.msra.mxu0 0.0
    %199 = vmatpush.msra.mxu0 0.0
    %200 = vmatpush.msra.mxu0 %v180
    %201 = vmatpush.msra.mxu0 %v179
    %202 = vmatpush.msra.mxu0 %v178
    %203 = vmatpush.msra.mxu0 %v177
    %204 = vmatmul.f32.gmra.mxu0 %v186
    %v205 = vpop.f32.mrf.mxu0
    %v206 = vadd.f32 %v183, %v205
    %207 = vdwg.mxu0
    %v208 = vmax.f32 %v206, 0.0
    %v209 = vand.u32 2147483647, %v206
    %v210 = vsub.f32 0.0, %v209
    %v211 = vmul.f32 %v210, 1.442695
    %v212 = vpow.pop %v211
    %v213 = vadd.f32 %v212, 1.0
    %v214 = vlog2.pop %v213
    %v215 = vmul.f32 %v214, 0.6931472
    %v216 = vmul.f32 -0.5, %v212
    %v217 = vadd.f32 %v216, 1.0
    %v218 = vmul.f32 %v217, %v212
    %v219 = vand.u32 2147483647, %v212
    %vm220 = vcmp.lt.f32.partialorder %v219, 0.0004427343
    %v221 = vsel %vm220, %v218, %v215
    %v222 = vadd.f32 %v208, %v221
    %v223 = vlaneseq
    %v224 = vand.u32 %v223, 127
    %vm225 = vcmp.lt.s32.totalorder %v224, 8
    %v226 = vsel %vm225, %v206, %v222
    %227 = vst.msk [vmem:[#allocation10] sm:$0xff] %vm120, %v226
    // Predicated region
    $region54: #{tpu_custom_call.1} parent=1 // pred_check
      _
    $region55: #{tpu_custom_call.1} parent=1 // pred_check_branch
      %229 = sbr.rel (0) target = $region57
    $region56: #{tpu_custom_call.1} parent=1 // pred_region
      %231 = vsyncadd [#allocation4], 0
      %s233 = sshll.u32 [#allocation10], 4
      %s234 = int_to_ptr.vmem [resolvable:$true] %s233
      %s235 = sshll.u32 %s9, 4
      %s236 = int_to_ptr.hbm [resolvable:$true] %s235
      %238 = dma.vmem_to_hbm [thread:$0]  %s234, 128, %s236, [#allocation4]
    $region57: #{tpu_custom_call.1} parent=1 // pred_fallthru
      _
    // Predicated region
    $region58: #{tpu_custom_call.1} parent=1 // pred_check
      _
    $region59: #{tpu_custom_call.1} parent=1 // pred_check_branch
      %240 = sbr.rel (0) target = $region61
    $region60: #{tpu_custom_call.1} parent=1 // pred_region
      %242 = dma.done [#allocation4], 128
    $region61: #{tpu_custom_call.1} parent=1 // pred_fallthru
      _
    %243 = vsyncpa [#allocation3], 1
    %244 = vsyncpa [#allocation6], 1
    %245 = vsyncpa [#allocation9], 1
    %246 = vsyncpa [#allocation4], 1

// kernel: tpu_custom_call.1
$region0: #{tpu_custom_call.1}
  #allocation0 [shape = 'u32[]', space=smem, size = 0x4, offset = 0x4, fixed_abs, tag = 'smem constant byte address 0x4 - core index']
  #allocation1 [shape = 'u32[72,128]{1,0:T(1,128)}', space=vmem, size = 0x9000, scoped, tag = 'internal scratch']
  %s0 = inlined_call_operand.hbm [shape: f32[8,16], index: 0, kind: input, shape index: {}]
  %s1 = inlined_call_operand.hbm [shape: f32[8,32], index: 1, kind: input, shape index: {}]
  %s2 = inlined_call_operand.hbm [shape: f32[8,8], index: 2, kind: input, shape index: {}]
  %s3 = inlined_call_operand.vmem [shape: f32[16,32], index: 3, kind: input, shape index: {}]
  %s4 = inlined_call_operand.vmem [shape: f32[32,32], index: 4, kind: input, shape index: {}]
  %s5 = inlined_call_operand.hbm [shape: f32[8,32], index: 5, kind: input, shape index: {}]
  %s6 = inlined_call_operand.vmem [shape: f32[1,32], index: 6, kind: input, shape index: {}]
  %s7 = inlined_call_operand.vmem [shape: f32[32,16], index: 7, kind: input, shape index: {}]
  %s8 = inlined_call_operand.vmem [shape: f32[1,16], index: 8, kind: input, shape index: {}]
  %s9 = inlined_call_operand.hbm [shape: f32[8,16], index: 9, kind: output, shape index: {}]
  %s10 = sld [smem:[#allocation0]]
  $region62: #{tpu_custom_call.1} parent=0
    _
  %s12 = ssub.s32 1, %s10
  %s13 = scalar_select 0, %s12, %s10
  $region1: #{tpu_custom_call.1} parent=0
    #allocation2 [shape = 'u8[4096]{0}', space=vmem, size = 0x1000, scoped, tag = 'input window, operand 0, single buffered']
    #allocation3 [shape = 's32[1]{0}', space=sflag, size = 0x4, scoped, tag = 'scoped memory for tpu_custom_call.1']
    #allocation4 [shape = 's32[1]{0}', space=sflag, size = 0x4, scoped, tag = 'scoped memory for tpu_custom_call.1']
    #allocation5 [shape = 'u8[4096]{0}', space=vmem, size = 0x1000, scoped, tag = 'input window, operand 1, single buffered']
    #allocation6 [shape = 's32[1]{0}', space=sflag, size = 0x4, scoped, tag = 'scoped memory for tpu_custom_call.1']
    #allocation7 [shape = 'u8[4096]{0}', space=vmem, size = 0x1000, scoped, tag = 'input window, operand 2, single buffered']
    #allocation8 [shape = 'u8[4096]{0}', space=vmem, size = 0x1000, scoped, tag = 'input window, operand 5, single buffered']
    #allocation9 [shape = 's32[1]{0}', space=sflag, size = 0x4, scoped, tag = 'scoped memory for tpu_custom_call.1']
    #allocation10 [shape = 'u8[4096]{0}', space=vmem, size = 0x1000, scoped, tag = 'output window, operand 0, single buffered']
    %14 = vsyncpa [#allocation3], 0
    %15 = vsyncpa [#allocation6], 0
    %16 = vsyncpa [#allocation9], 0
    %17 = vsyncpa [#allocation4], 0
    // Predicated region
    $region2: #{tpu_custom_call.1} parent=1 // pred_check
      _
    $region3: #{tpu_custom_call.1} parent=1 // pred_check_branch
      %19 = sbr.rel (0) target = $region5
    $region4: #{tpu_custom_call.1} parent=1 // pred_region
      %21 = vsyncadd [#allocation3], 0
      %s23 = sshll.u32 %s0, 4
      %s24 = int_to_ptr.hbm [resolvable:$true] %s23
      %s25 = sshll.u32 [#allocation2], 4
      %s26 = int_to_ptr.vmem [resolvable:$true] %s25
      %28 = dma.hbm_to_vmem [thread:$0]  %s24, 128, %s26, [#allocation3]
    $region5: #{tpu_custom_call.1} parent=1 // pred_fallthru
      _
    // Predicated region
    $region6: #{tpu_custom_call.1} parent=1 // pred_check
      _
    $region7: #{tpu_custom_call.1} parent=1 // pred_check_branch
      %30 = sbr.rel (0) target = $region9
    $region8: #{tpu_custom_call.1} parent=1 // pred_region
      %32 = vsyncadd [#allocation6], 0
      %s34 = sshll.u32 %s1, 4
      %s35 = int_to_ptr.hbm [resolvable:$true] %s34
      %s36 = sshll.u32 [#allocation5], 4
      %s37 = int_to_ptr.vmem [resolvable:$true] %s36
      %39 = dma.hbm_to_vmem [thread:$0]  %s35, 128, %s37, [#allocation6]
    $region9: #{tpu_custom_call.1} parent=1 // pred_fallthru
      _
    // Predicated region
    $region10: #{tpu_custom_call.1} parent=1 // pred_check
      _
    $region11: #{tpu_custom_call.1} parent=1 // pred_check_branch
      %41 = sbr.rel (0) target = $region13
    $region12: #{tpu_custom_call.1} parent=1 // pred_region
      %43 = vsyncadd [#allocation6], 0
      %s45 = sshll.u32 %s2, 4
      %s46 = int_to_ptr.hbm [resolvable:$true] %s45
      %s47 = sshll.u32 [#allocation7], 4
      %s48 = int_to_ptr.vmem [resolvable:$true] %s47
      %50 = dma.hbm_to_vmem [thread:$0]  %s46, 128, %s48, [#allocation6]
    $region13: #{tpu_custom_call.1} parent=1 // pred_fallthru
      _
    // Predicated region
    $region14: #{tpu_custom_call.1} parent=1 // pred_check
      _
    $region15: #{tpu_custom_call.1} parent=1 // pred_check_branch
      %52 = sbr.rel (0) target = $region17
    $region16: #{tpu_custom_call.1} parent=1 // pred_region
      _
    $region17: #{tpu_custom_call.1} parent=1 // pred_fallthru
      _
    // Predicated region
    $region18: #{tpu_custom_call.1} parent=1 // pred_check
      _
    $region19: #{tpu_custom_call.1} parent=1 // pred_check_branch
      %54 = sbr.rel (0) target = $region21
    $region20: #{tpu_custom_call.1} parent=1 // pred_region
      _
    $region21: #{tpu_custom_call.1} parent=1 // pred_fallthru
      _
    // Predicated region
    $region22: #{tpu_custom_call.1} parent=1 // pred_check
      _
    $region23: #{tpu_custom_call.1} parent=1 // pred_check_branch
      %56 = sbr.rel (0) target = $region25
    $region24: #{tpu_custom_call.1} parent=1 // pred_region
      %58 = vsyncadd [#allocation9], 0
      %s60 = sshll.u32 %s5, 4
      %s61 = int_to_ptr.hbm [resolvable:$true] %s60
      %s62 = sshll.u32 [#allocation8], 4
      %s63 = int_to_ptr.vmem [resolvable:$true] %s62
      %65 = dma.hbm_to_vmem [thread:$0]  %s61, 128, %s63, [#allocation9]
    $region25: #{tpu_custom_call.1} parent=1 // pred_fallthru
      _
    // Predicated region
    $region26: #{tpu_custom_call.1} parent=1 // pred_check
      _
    $region27: #{tpu_custom_call.1} parent=1 // pred_check_branch
      %67 = sbr.rel (0) target = $region29
    $region28: #{tpu_custom_call.1} parent=1 // pred_region
      _
    $region29: #{tpu_custom_call.1} parent=1 // pred_fallthru
      _
    // Predicated region
    $region30: #{tpu_custom_call.1} parent=1 // pred_check
      _
    $region31: #{tpu_custom_call.1} parent=1 // pred_check_branch
      %69 = sbr.rel (0) target = $region33
    $region32: #{tpu_custom_call.1} parent=1 // pred_region
      _
    $region33: #{tpu_custom_call.1} parent=1 // pred_fallthru
      _
    // Predicated region
    $region34: #{tpu_custom_call.1} parent=1 // pred_check
      _
    $region35: #{tpu_custom_call.1} parent=1 // pred_check_branch
      %71 = sbr.rel (0) target = $region37
    $region36: #{tpu_custom_call.1} parent=1 // pred_region
      _
    $region37: #{tpu_custom_call.1} parent=1 // pred_fallthru
      _
    // Predicated region
    $region38: #{tpu_custom_call.1} parent=1 // pred_check
      _
    $region39: #{tpu_custom_call.1} parent=1 // pred_check_branch
      %73 = sbr.rel (0) target = $region41
    $region40: #{tpu_custom_call.1} parent=1 // pred_region
      %75 = dma.done [#allocation3], 128
    $region41: #{tpu_custom_call.1} parent=1 // pred_fallthru
      _
    // Predicated region
    $region42: #{tpu_custom_call.1} parent=1 // pred_check
      _
    $region43: #{tpu_custom_call.1} parent=1 // pred_check_branch
      %77 = sbr.rel (0) target = $region45
    $region44: #{tpu_custom_call.1} parent=1 // pred_region
      %79 = dma.done [#allocation6], 128
    $region45: #{tpu_custom_call.1} parent=1 // pred_fallthru
      _
    // Predicated region
    $region46: #{tpu_custom_call.1} parent=1 // pred_check
      _
    $region47: #{tpu_custom_call.1} parent=1 // pred_check_branch
      %81 = sbr.rel (0) target = $region49
    $region48: #{tpu_custom_call.1} parent=1 // pred_region
      %83 = dma.done [#allocation6], 128
    $region49: #{tpu_custom_call.1} parent=1 // pred_fallthru
      _
    // Predicated region
    $region50: #{tpu_custom_call.1} parent=1 // pred_check
      _
    $region51: #{tpu_custom_call.1} parent=1 // pred_check_branch
      %85 = sbr.rel (0) target = $region53
    $region52: #{tpu_custom_call.1} parent=1 // pred_region
      %87 = dma.done [#allocation9], 128
    $region53: #{tpu_custom_call.1} parent=1 // pred_fallthru
      _
    %v88 = vld [vmem:[#allocation2] sm:$0xff]
    %v89 = vld [vmem:[%s3] sm:$0xff]
    %v90 = vld [vmem:[%s3 + $0x8] sm:$0xff]
    %v91 = vld [vmem:[#allocation5] sm:$0xff]
    %v92 = vld [vmem:[%s4] sm:$0xff]
    %v93 = vld [vmem:[%s4 + $0x8] sm:$0xff]
    %v94 = vld [vmem:[%s4 + $0x10] sm:$0xff]
    %v95 = vld [vmem:[%s4 + $0x18] sm:$0xff]
    %vm96 = vcmask 261120
    %v98 = vsel %vm96, %v91, 0
    %100 = vmatpush.msra.mxu0 0.0
    %101 = vmatpush.msra.mxu0 0.0
    %102 = vmatpush.msra.mxu0 0.0
    %103 = vmatpush.msra.mxu0 0.0
    %104 = vmatpush.msra.mxu0 0.0
    %105 = vmatpush.msra.mxu0 0.0
    %106 = vmatpush.msra.mxu0 0.0
    %107 = vmatpush.msra.mxu0 0.0
    %108 = vmatpush.msra.mxu0 0.0
    %109 = vmatpush.msra.mxu0 0.0
    %110 = vmatpush.msra.mxu0 0.0
    %111 = vmatpush.msra.mxu0 0.0
    %112 = vmatpush.msra.mxu0 %v95
    %113 = vmatpush.msra.mxu0 %v94
    %114 = vmatpush.msra.mxu0 %v93
    %115 = vmatpush.msra.mxu0 %v92
    %116 = vmatmul.f32.gmra.mxu0 %v98
    %v117 = vpop.f32.mrf.mxu0
    %v118 = vadd.f32 0.0, %v117
    %119 = vdwg.mxu0
    %vm120 = vcmask 130048
    %v122 = vsel %vm120, %v88, 0
    %124 = vmatpush.msra.mxu0 0.0
    %125 = vmatpush.msra.mxu0 0.0
    %126 = vmatpush.msra.mxu0 0.0
    %127 = vmatpush.msra.mxu0 0.0
    %128 = vmatpush.msra.mxu0 0.0
    %129 = vmatpush.msra.mxu0 0.0
    %130 = vmatpush.msra.mxu0 0.0
    %131 = vmatpush.msra.mxu0 0.0
    %132 = vmatpush.msra.mxu0 0.0
    %133 = vmatpush.msra.mxu0 0.0
    %134 = vmatpush.msra.mxu0 0.0
    %135 = vmatpush.msra.mxu0 0.0
    %136 = vmatpush.msra.mxu0 0.0
    %137 = vmatpush.msra.mxu0 0.0
    %138 = vmatpush.msra.mxu0 %v90
    %139 = vmatpush.msra.mxu0 %v89
    %140 = vmatmul.f32.gmra.mxu0 %v122
    %v141 = vpop.f32.mrf.mxu0
    %v142 = vadd.f32 %v118, %v141
    %143 = vdwg.mxu0
    %v144 = vld [vmem:[#allocation7] sm:$0xff]
    %v145 = vld [vmem:[#allocation8] sm:$0xff]
    %vm146 = vcmask 64512
    %v148 = vsel %vm146, %v144, 0
    %150 = vmatpush.msra.mxu0 0.0
    %151 = vmatpush.msra.mxu0 0.0
    %152 = vmatpush.msra.mxu0 0.0
    %153 = vmatpush.msra.mxu0 0.0
    %154 = vmatpush.msra.mxu0 0.0
    %155 = vmatpush.msra.mxu0 0.0
    %156 = vmatpush.msra.mxu0 0.0
    %157 = vmatpush.msra.mxu0 0.0
    %158 = vmatpush.msra.mxu0 0.0
    %159 = vmatpush.msra.mxu0 0.0
    %160 = vmatpush.msra.mxu0 0.0
    %161 = vmatpush.msra.mxu0 0.0
    %162 = vmatpush.msra.mxu0 0.0
    %163 = vmatpush.msra.mxu0 0.0
    %164 = vmatpush.msra.mxu0 0.0
    %165 = vmatpush.msra.mxu0 %v145
    %166 = vmatmul.f32.gmra.mxu0 %v148
    %v167 = vpop.f32.mrf.mxu0
    %v168 = vadd.f32 0.0, %v167
    %169 = vdwg.mxu0
    %v170 = vadd.f32 %v142, %v168
    %v171 = vld [vmem:[%s6] sm:$0x1]
    %v173 = vperm.slane %v171, 0
    %v175 = vadd.f32 %v170, %v173
    %v176 = vmax.f32 %v175, 0.0
    %v177 = vld [vmem:[%s7] sm:$0xff]
    %v178 = vld [vmem:[%s7 + $0x8] sm:$0xff]
    %v179 = vld [vmem:[%s7 + $0x10] sm:$0xff]
    %v180 = vld [vmem:[%s7 + $0x18] sm:$0xff]
    %v181 = vld [vmem:[%s8] sm:$0x1]
    %v183 = vperm.slane %v181, 0
    %v186 = vsel %vm96, %v176, 0
    %188 = vmatpush.msra.mxu0 0.0
    %189 = vmatpush.msra.mxu0 0.0
    %190 = vmatpush.msra.mxu0 0.0
    %191 = vmatpush.msra.mxu0 0.0
    %192 = vmatpush.msra.mxu0 0.0
    %193 = vmatpush.msra.mxu0 0.0
    %194 = vmatpush.msra.mxu0 0.0
    %195 = vmatpush.msra.mxu0 0.0
    %196 = vmatpush.msra.mxu0 0.0
    %197 = vmatpush.msra.mxu0 0.0
    %198 = vmatpush.msra.mxu0 0.0
    %199 = vmatpush.msra.mxu0 0.0
    %200 = vmatpush.msra.mxu0 %v180
    %201 = vmatpush.msra.mxu0 %v179
    %202 = vmatpush.msra.mxu0 %v178
    %203 = vmatpush.msra.mxu0 %v177
    %204 = vmatmul.f32.gmra.mxu0 %v186
    %v205 = vpop.f32.mrf.mxu0
    %v206 = vadd.f32 %v183, %v205
    %207 = vdwg.mxu0
    %v208 = vmax.f32 %v206, 0.0
    %v209 = vand.u32 2147483647, %v206
    %v210 = vsub.f32 0.0, %v209
    %v211 = vmul.f32 %v210, 1.442695
    %v212 = vpow.pop %v211
    %v213 = vadd.f32 %v212, 1.0
    %v214 = vlog2.pop %v213
    %v215 = vmul.f32 %v214, 0.6931472
    %v216 = vmul.f32 -0.5, %v212
    %v217 = vadd.f32 %v216, 1.0
    %v218 = vmul.f32 %v217, %v212
    %v219 = vand.u32 2147483647, %v212
    %vm220 = vcmp.lt.f32.partialorder %v219, 0.0004427343
    %v221 = vsel %vm220, %v218, %v215
    %v222 = vadd.f32 %v208, %v221
    %v223 = vlaneseq
    %v224 = vand.u32 %v223, 127
    %vm225 = vcmp.lt.s32.totalorder %v224, 8
    %v226 = vsel %vm225, %v206, %v222
    %227 = vst.msk [vmem:[#allocation10] sm:$0xff] %vm120, %v226
    // Predicated region
    $region54: #{tpu_custom_call.1} parent=1 // pred_check
      _
    $region55: #{tpu_custom_call.1} parent=1 // pred_check_branch
      %229 = sbr.rel (0) target = $region57
    $region56: #{tpu_custom_call.1} parent=1 // pred_region
      %231 = vsyncadd [#allocation4], 0
      %s233 = sshll.u32 [#allocation10], 4
      %s234 = int_to_ptr.vmem [resolvable:$true] %s233
      %s235 = sshll.u32 %s9, 4
      %s236 = int_to_ptr.hbm [resolvable:$true] %s235
      %238 = dma.vmem_to_hbm [thread:$0]  %s234, 128, %s236, [#allocation4]
    $region57: #{tpu_custom_call.1} parent=1 // pred_fallthru
      _
    // Predicated region
    $region58: #{tpu_custom_call.1} parent=1 // pred_check
      _
    $region59: #{tpu_custom_call.1} parent=1 // pred_check_branch
      %240 = sbr.rel (0) target = $region61
    $region60: #{tpu_custom_call.1} parent=1 // pred_region
      %242 = dma.done [#allocation4], 128
    $region61: #{tpu_custom_call.1} parent=1 // pred_fallthru
      _
    %243 = vsyncpa [#allocation3], 1
    %244 = vsyncpa [#allocation6], 1
    %245 = vsyncpa [#allocation9], 1
    %246 = vsyncpa [#allocation4], 1

</llo_original>
